<compile_context>
chip_gen: v7x
topology: tpu7x:2x2x1
jax: 0.10.0
libtpu: 0.0.40
codegen_flags: <defaults>
</compile_context>

<pallas_src>
import jax
import jax.numpy as jnp
from jax.experimental import pallas as pl
from jax.experimental.pallas import tpu as pltpu


def _pos_add_kernel(x_ref, pos_ref, o_ref):
    # x_ref/o_ref: (TB, TD) tile; pos_ref: (1, TD), broadcast over the batch
    # (sublane) axis by the VPU add.
    o_ref[...] = x_ref[...] + pos_ref[...]


def _round_up(n: int, m: int) -> int:
    return ((n + m - 1) // m) * m


def _gen_params():
    """Generation-aware (budget_for_6x_block, max_row_bytes, vmem_limit_bytes)."""
    vmem_cap = 128 << 20
    try:
        info = pltpu.get_tpu_info()
        vmem_cap = int(getattr(info, "vmem_capacity_bytes", vmem_cap))
    except Exception:
        pass
    if vmem_cap <= (64 << 20):
        # v7x-like: 3.2 TB/s HBM + 64 MiB VMEM per TC -> larger blocks cut the
        # ~0.35 us per-step overhead; keep 6x block well under physical VMEM.
        return 32 << 20, 512 << 10, 44 << 20
    # v5e/v6e (128 MiB VMEM): ~2 MiB blocks are already ~85-90% of roofline.
    return 12 << 20, 128 << 10, 20 << 20


def _choose_tiles(B: int, N: int, itemsize: int, budget: int,
                  max_row_bytes: int, sub: int):
    """Pick (TB, TD) respecting (sub, 128) block rules and the VMEM budget."""
    # Lane tile: full row unless the row is large and 128-divisible.
    if N % 128 == 0 and N * itemsize > max_row_bytes:
        td = max(128, ((max_row_bytes // itemsize) // 128) * 128)
    else:
        td = N
    row_bytes = td * itemsize

    # Batch tile: ~6x block bytes (double-buffered x/pos/out) <= budget.
    tb = max(1, budget // (6 * row_bytes))
    tb = min(tb, B)
    if B <= sub:
        tb = B                        # equals full dim -> always legal
    elif tb < sub:
        tb = sub                      # minimum native sublane tile when B > sub
    else:
        tb = (tb // sub) * sub        # multiple of the native sublane tile
    return tb, td


def positional_embedding_forward(x: jnp.ndarray, pos_embedding: jnp.ndarray) -> jnp.ndarray:
    """x: (B, S, D); pos_embedding: (1, seq_len, D) with seq_len >= S."""
    B, S, D = x.shape
    seq_full = pos_embedding.shape[1]
    N = S * D
    itemsize = jnp.dtype(x.dtype).itemsize

    budget, max_row_bytes, vmem_limit = _gen_params()
    # Native sublane tile: 8 rows for 4-byte, 16 for bf16/fp16, 32 for int8/fp8.
    sub = max(8, 32 // max(1, itemsize))

    # If the row is large and NOT 128-divisible, a full-width block could blow
    # the VMEM budget; pad the lane axis up to a 128-multiple instead.
    pad_to = 0
    if N % 128 != 0 and 6 * min(B, sub) * N * itemsize > budget:
        pad_to = _round_up(N, 128)

    # Lane-dense 2D slab: last dim S*D, batch on the sublane/grid axis.
    x2 = x.reshape(B, N)

    # pos: avoid the extra slice/cast HBM round-trip when we can read the
    # original embedding directly (free reshape view).
    if (pad_to == 0 and pos_embedding.dtype == x.dtype
            and (S == seq_full or N % 128 == 0)):
        pos2 = pos_embedding.reshape(1, seq_full * D)   # first N cols are pos[:, :S, :]
    else:
        pos2 = pos_embedding[:, :S, :].astype(x.dtype).reshape(1, N)

    Np = N
    if pad_to:
        x2 = jnp.pad(x2, ((0, 0), (0, pad_to - N)))
        pos2 = jnp.pad(pos2, ((0, 0), (0, pad_to - N)))
        Np = pad_to

    TB, TD = _choose_tiles(B, Np, itemsize, budget, max_row_bytes, sub)

    # Guarantee >= 2 grid steps along a parallel axis when the problem is big
    # enough to care (megacore sharding + read/write DMA overlap).
    nj, ni = pl.cdiv(Np, TD), pl.cdiv(B, TB)
    if nj * ni == 1 and 2 * B * Np * itemsize > (4 << 20):
        if B > sub:
            TB = max(sub, ((TB // 2) // sub) * sub)
        elif Np % 256 == 0:
            TD = max(128, ((TD // 2) // 128) * 128)
        nj, ni = pl.cdiv(Np, TD), pl.cdiv(B, TB)

    # Batch axis innermost (fastest-varying): pos's block index (0, j) is
    # constant across consecutive steps, so it is DMA'd once per lane block.
    grid = (nj, ni)

    out2 = pl.pallas_call(
        _pos_add_kernel,
        out_shape=jax.ShapeDtypeStruct((B, Np), x.dtype),
        grid_spec=pltpu.PrefetchScalarGridSpec(
            num_scalar_prefetch=0,
            grid=grid,
            in_specs=[
                pl.BlockSpec((TB, TD), lambda j, i: (i, j)),
                pl.BlockSpec((1, TD), lambda j, i: (0, j)),
            ],
            out_specs=pl.BlockSpec((TB, TD), lambda j, i: (i, j)),
        ),
        compiler_params=pltpu.CompilerParams(
            dimension_semantics=("parallel", "parallel"),
            vmem_limit_bytes=vmem_limit,
        ),
        cost_estimate=pl.CostEstimate(
            flops=B * N,
            transcendentals=0,
            bytes_accessed=(2 * B * N + N) * itemsize,
        ),
    )(x2, pos2)

    if pad_to:
        out2 = out2[:, :N]
    return out2.reshape(B, S, D)


if __name__ == "__main__":
    # Shapes consistent with the module: batch=2, seq_len=8, dim=32
    batch, seq_len, dim = 2, 8, 32

    key = jax.random.PRNGKey(0)
    kx, kp = jax.random.split(key)

    x = jax.random.normal(kx, (batch, seq_len, dim), dtype=jnp.float32)
    # Deterministic "learned" parameter, matching nn.init.normal_(std=0.02)
    pos_embedding = 0.02 * jax.random.normal(kp, (1, seq_len, dim), dtype=jnp.float32)

    out = positional_embedding_forward(x, pos_embedding)
    out = jax.block_until_ready(out)

    # Sanity-check against the pure-JAX reference
    ref = x + pos_embedding[:, :seq_len, :]
    assert out.shape == (batch, seq_len, dim)
    assert jnp.allclose(out, ref, atol=1e-6), "mismatch vs reference"

    print("KERNEL_OK")
</pallas_src>

<mosaic_0001>
module attributes {stable_mosaic.version = 11 : i64} {
  func.func @_pos_add_kernel(%arg0: i32, %arg1: i32, %arg2: memref<2x256xf32, #tpu.memory_space<vmem>>, %arg3: memref<1x256xf32, #tpu.memory_space<vmem>>, %arg4: memref<2x256xf32, #tpu.memory_space<vmem>>) attributes {dimension_semantics = [#tpu.dimension_semantics<parallel>, #tpu.dimension_semantics<parallel>], iteration_bounds = array<i64: 1, 1>, scalar_prefetch = 0 : i64, scratch_operands = 0 : i64, tpu.core_type = #tpu.core_type<tc>, window_params = [{transform_indices = @transform_0, window_bounds = array<i64: 2, 256>}, {transform_indices = @transform_1, window_bounds = array<i64: 1, 256>}, {transform_indices = @transform_2, window_bounds = array<i64: 2, 256>}]} {
    %c0 = arith.constant 0 : index
    %c0_0 = arith.constant 0 : index
    %0 = vector.load %arg2[%c0, %c0_0] : memref<2x256xf32, #tpu.memory_space<vmem>>, vector<2x256xf32>
    %c0_1 = arith.constant 0 : index
    %c0_2 = arith.constant 0 : index
    %1 = vector.load %arg3[%c0_1, %c0_2] : memref<1x256xf32, #tpu.memory_space<vmem>>, vector<1x256xf32>
    %2 = vector.broadcast %1 : vector<1x256xf32> to vector<2x256xf32>
    %3 = arith.addf %0, %2 : vector<2x256xf32>
    %c0_3 = arith.constant 0 : index
    %c0_4 = arith.constant 0 : index
    %4 = vector.load %arg4[%c0_3, %c0_4] : memref<2x256xf32, #tpu.memory_space<vmem>>, vector<2x256xf32>
    tpu.vector_store %arg4[%c0_3, %c0_4], %3 {strides = array<i32>} : memref<2x256xf32, #tpu.memory_space<vmem>>, vector<2x256xf32>,
    return
  }
  func.func @transform_0(%arg0: i32, %arg1: i32) -> (i32, i32) {
    %c0_i32 = arith.constant 0 : i32
    return %arg1, %arg0 : i32, i32
  }
  func.func @transform_1(%arg0: i32, %arg1: i32) -> (i32, i32) {
    %c0_i32 = arith.constant 0 : i32
    %c0_i32_0 = arith.constant 0 : i32
    return %c0_i32, %arg0 : i32, i32
  }
  func.func @transform_2(%arg0: i32, %arg1: i32) -> (i32, i32) {
    %c0_i32 = arith.constant 0 : i32
    return %arg1, %arg0 : i32, i32
  }
}

</mosaic_0001>

<llo_original>
// kernel: tpu_custom_call.1
$region0: #{tpu_custom_call.1}
  #allocation0 [shape = 'u32[]', space=smem, size = 0x4, offset = 0x4, fixed_abs, tag = 'smem constant byte address 0x4 - core index']
  #allocation1 [shape = 'u32[144,128]{1,0:T(1,128)}', space=vmem, size = 0x12000, scoped, tag = 'internal scratch']
  %s0 = inlined_call_operand.hbm [shape: f32[2,256], index: 0, kind: input, shape index: {}]
  %s1 = inlined_call_operand.vmem [shape: f32[1,256], index: 1, kind: input, shape index: {}]
  %s2 = inlined_call_operand.hbm [shape: f32[2,256], index: 2, kind: output, shape index: {}]
  %s3 = sld [smem:[#allocation0]]
  $region22: #{tpu_custom_call.1} parent=0
    _
  %s5 = ssub.s32 1, %s3
  %s6 = scalar_select 0, %s5, %s3
  $region1: #{tpu_custom_call.1} parent=0
    #allocation2 [shape = 'u8[2048]{0}', space=vmem, size = 0x800, scoped, tag = 'input window, operand 0, single buffered']
    #allocation3 [shape = 's32[1]{0}', space=sflag, size = 0x4, scoped, tag = 'scoped memory for tpu_custom_call.1']
    #allocation4 [shape = 's32[1]{0}', space=sflag, size = 0x4, scoped, tag = 'scoped memory for tpu_custom_call.1']
    #allocation5 [shape = 'u8[2048]{0}', space=vmem, size = 0x800, scoped, tag = 'output window, operand 0, single buffered']
    %7 = vsyncpa [#allocation3], 0
    %8 = vsyncpa [#allocation4], 0
    // Predicated region
    $region2: #{tpu_custom_call.1} parent=1 // pred_check
      _
    $region3: #{tpu_custom_call.1} parent=1 // pred_check_branch
      %10 = sbr.rel (0) target = $region5
    $region4: #{tpu_custom_call.1} parent=1 // pred_region
      %s12 = ssub.s32 64, 64
      %13 = vsyncadd [#allocation3], %s12
      %s15 = sshll.u32 [#allocation2], 4
      %s16 = int_to_ptr.vmem [resolvable:$true] %s15
      %18 = dma.hbm_to_vmem [thread:$0]  %s0, 64, %s16, [#allocation3]
    $region5: #{tpu_custom_call.1} parent=1 // pred_fallthru
      _
    // Predicated region
    $region6: #{tpu_custom_call.1} parent=1 // pred_check
      _
    $region7: #{tpu_custom_call.1} parent=1 // pred_check_branch
      %20 = sbr.rel (0) target = $region9
    $region8: #{tpu_custom_call.1} parent=1 // pred_region
      _
    $region9: #{tpu_custom_call.1} parent=1 // pred_fallthru
      _
    // Predicated region
    $region10: #{tpu_custom_call.1} parent=1 // pred_check
      _
    $region11: #{tpu_custom_call.1} parent=1 // pred_check_branch
      %22 = sbr.rel (0) target = $region13
    $region12: #{tpu_custom_call.1} parent=1 // pred_region
      %23 = dma.done [#allocation3], 64
    $region13: #{tpu_custom_call.1} parent=1 // pred_fallthru
      _
    %v24 = vld [vmem:[#allocation2] sm:$0xf]
    %v25 = vld [vmem:[%s1] sm:$0x3]
    %v27 = vlaneseq
    %v28 = vshrl.u32 %v27, 7
    %v29 = vsub.s32 0, %v28
    %v30 = vrot.slane %v25, %v29
    %v31 = vlaneseq
    %v32 = vshrl.u32 %v31, 7
    %v33 = vsub.s32 1, %v32
    %v34 = vrot.slane %v25, %v33
    %v35 = vcombine.low %v30, %v34
    %v37 = vunpack.c.l.s4 1983009808
    %v38 = vunpack.c.0.s8 %v37
    %v39 = vlaneseq
    %v40 = vshrl.u32 %v39, 7
    %v41 = vsub.s32 %v38, %v40
    %v42 = vrot.slane %v35, %v41
    %v44 = vadd.f32 %v24, %v42
    %45 = vst [vmem:[#allocation5] sm:$0xf] %v44
    // Predicated region
    $region14: #{tpu_custom_call.1} parent=1 // pred_check
      _
    $region15: #{tpu_custom_call.1} parent=1 // pred_check_branch
      %47 = sbr.rel (0) target = $region17
    $region16: #{tpu_custom_call.1} parent=1 // pred_region
      %s49 = ssub.s32 64, 64
      %50 = vsyncadd [#allocation4], %s49
      %s52 = sshll.u32 [#allocation5], 4
      %s53 = int_to_ptr.vmem [resolvable:$true] %s52
      %55 = dma.vmem_to_hbm [thread:$0]  %s53, 64, %s2, [#allocation4]
    $region17: #{tpu_custom_call.1} parent=1 // pred_fallthru
      _
    // Predicated region
    $region18: #{tpu_custom_call.1} parent=1 // pred_check
      _
    $region19: #{tpu_custom_call.1} parent=1 // pred_check_branch
      %57 = sbr.rel (0) target = $region21
    $region20: #{tpu_custom_call.1} parent=1 // pred_region
      %58 = dma.done [#allocation4], 64
    $region21: #{tpu_custom_call.1} parent=1 // pred_fallthru
      _
    %59 = vsyncpa [#allocation3], 1
    %60 = vsyncpa [#allocation4], 1

</llo_original>
